<compile_context>
chip_gen: v6e
topology: v6e:2x2x1
jax: 0.10.0
libtpu: 0.0.40
codegen_flags: <defaults>
</compile_context>

<pallas_src>
import functools

import jax
import jax.numpy as jnp
from jax import lax
from jax.experimental import pallas as pl
from jax.experimental.pallas import tpu as pltpu

D_MODEL = 768
LN_EPS = 1e-5          # nn.LayerNorm default
P_BLEND = 0.6          # self.p in the module


def _pick_tile(n, max_tile, quantum):
    """Largest divisor of n that is <= max_tile and a multiple of `quantum`;
    falls back to the full extent n (always legal for BlockSpec)."""
    for cand in range(min(max_tile, n), 0, -1):
        if n % cand == 0 and cand % quantum == 0:
            return cand
    return n


def _make_kernel(must: bool, apply_dropout: bool, inv_s: float):
    """Fused seq-sum + LayerNorm + blend + dropout + linear kernel."""

    def kernel(*refs):
        idx = 0
        hid_ref = refs[idx]; idx += 1
        ctx_ref = None
        if must:
            ctx_ref = refs[idx]; idx += 1
        gamma_ref = refs[idx]; idx += 1
        beta_ref = refs[idx]; idx += 1
        w_ref = refs[idx]; idx += 1
        b_ref = refs[idx]; idx += 1
        mask_ref = None
        if apply_dropout:
            mask_ref = refs[idx]; idx += 1
        out_ref = refs[idx]; idx += 1
        acc_h = refs[idx]; idx += 1
        acc_c = refs[idx] if must else None

        s_step = pl.program_id(1)

        @pl.when(s_step == 0)
        def _init():
            acc_h[...] = jnp.zeros_like(acc_h)
            if must:
                acc_c[...] = jnp.zeros_like(acc_c)

        # Streaming phase: raw f32 sum over the S tile (1 add / loaded element).
        acc_h[...] += jnp.sum(hid_ref[...].astype(jnp.float32), axis=1)
        if must:
            acc_c[...] += jnp.sum(ctx_ref[...].astype(jnp.float32), axis=1)

        @pl.when(s_step == pl.num_programs(1) - 1)
        def _epilogue():
            gamma = gamma_ref[...]            # (1, D)
            beta = beta_ref[...]              # (1, D)

            def layer_norm(acc):              # acc: (TB, D) f32 raw sums
                pooled = acc * inv_s          # torch.mean(..., dim=1)
                mu = jnp.mean(pooled, axis=-1, keepdims=True)
                diff = pooled - mu
                var = jnp.mean(diff * diff, axis=-1, keepdims=True)
                # fold gamma into the rsqrt scale (single multiply)
                return diff * (lax.rsqrt(var + LN_EPS) * gamma) + beta

            v = layer_norm(acc_h[...])
            if must:
                c = layer_norm(acc_c[...])
                # matches PyTorch: (v * p + c * (1 - p)) / 2
                v = (v * P_BLEND + c * (1.0 - P_BLEND)) * 0.5

            if apply_dropout:
                v = v * mask_ref[...]         # mask already scaled by 1/keep_prob

            out_ref[...] = (
                jnp.dot(v, w_ref[...], preferred_element_type=jnp.float32)
                + b_ref[...]
            )

    return kernel


@functools.partial(jax.jit, static_argnames=("must", "check", "dropout_p"))
def visual_classification_forward(hidden, context_hidden, gamma, beta, w, b,
                                  rng_key, *, must, check="train",
                                  dropout_p=0.5):
    """hidden / context_hidden: (B, S, 768) backbone outputs (f32 or bf16)."""
    B, S, D = hidden.shape
    out_dim = w.shape[1]
    train = (check == "train")
    apply_dropout = train and dropout_p > 0.0
    keep_prob = 1.0 - dropout_p

    # Lane-dense output: pad the Linear's N dim to a multiple of 128.
    n_pad = max(128, ((out_dim + 127) // 128) * 128)
    w_p = jnp.zeros((D, n_pad), jnp.float32).at[:, :out_dim].set(
        w.astype(jnp.float32))
    b_p = jnp.zeros((1, n_pad), jnp.float32).at[:, :out_dim].set(
        b.reshape(1, out_dim).astype(jnp.float32))

    # Tile sizes: small enough for v7x's 64 MiB VMEM even with 2 streams
    # double-buffered, big enough to amortize per-step overhead.
    TB = _pick_tile(B, 8, 8)        # multiple of 8, or full B
    TS = _pick_tile(S, 256, 8)      # multiple of 8, or full S
    grid = (B // TB, S // TS)

    kernel = _make_kernel(must, apply_dropout, 1.0 / S)

    in_specs = [pl.BlockSpec((TB, TS, D), lambda bi, si: (bi, si, 0))]
    args = [hidden]
    if must:
        # Context stream is only DMA'd when the must-branch is active.
        in_specs.append(pl.BlockSpec((TB, TS, D), lambda bi, si: (bi, si, 0)))
        args.append(context_hidden)

    in_specs += [
        pl.BlockSpec((1, D), lambda bi, si: (0, 0)),        # ln gamma
        pl.BlockSpec((1, D), lambda bi, si: (0, 0)),        # ln beta
        pl.BlockSpec((D, n_pad), lambda bi, si: (0, 0)),    # linear weight (padded)
        pl.BlockSpec((1, n_pad), lambda bi, si: (0, 0)),    # linear bias (padded)
    ]
    args += [
        gamma.reshape(1, D).astype(jnp.float32),
        beta.reshape(1, D).astype(jnp.float32),
        w_p, b_p,
    ]

    if apply_dropout:
        keep = jax.random.bernoulli(rng_key, keep_prob, (B, D))
        drop_mask = keep.astype(jnp.float32) * (1.0 / keep_prob)
        in_specs.append(pl.BlockSpec((TB, D), lambda bi, si: (bi, 0)))
        args.append(drop_mask)

    scratch_shapes = [pltpu.VMEM((TB, D), jnp.float32)]
    if must:
        scratch_shapes.append(pltpu.VMEM((TB, D), jnp.float32))

    n_streams = 2 if must else 1
    elt_bytes = jnp.dtype(hidden.dtype).itemsize
    cost = pl.CostEstimate(
        flops=n_streams * B * S * D + 2 * B * D * n_pad,
        transcendentals=0,
        bytes_accessed=(n_streams * B * S * D * elt_bytes
                        + (D * n_pad + B * n_pad + 2 * D) * 4),
    )

    out_pad = pl.pallas_call(
        kernel,
        out_shape=jax.ShapeDtypeStruct((B, n_pad), jnp.float32),
        grid=grid,
        in_specs=in_specs,
        out_specs=pl.BlockSpec((TB, n_pad), lambda bi, si: (bi, 0)),
        scratch_shapes=scratch_shapes,
        compiler_params=pltpu.CompilerParams(
            dimension_semantics=("parallel", "arbitrary")),
        cost_estimate=cost,
    )(*args)

    return out_pad[:, :out_dim]


if __name__ == "__main__":
    # Small deterministic shapes consistent with the module's forward:
    # B=2 videos, S=8 backbone tokens, D=768 hidden, output_dim=4.
    B, S, D = 2, 8, D_MODEL
    OUT_DIM = 4
    DROPOUT = 0.5
    DATASET = "mustard"                       # contains 'must' -> must=True branch
    must = "must" in DATASET.lower()

    key = jax.random.PRNGKey(0)
    k_hid, k_ctx, k_g, k_b, k_w, k_bias, k_drop = jax.random.split(key, 7)

    # Synthetic VideoMAE hidden-state outputs (stand-in for the backbone), bf16.
    hidden = jax.random.normal(k_hid, (B, S, D), dtype=jnp.bfloat16)
    context_hidden = jax.random.normal(k_ctx, (B, S, D), dtype=jnp.bfloat16)

    # Parameters: LayerNorm(768), Linear(768, out_dim).
    gamma = jnp.ones((1, D), dtype=jnp.float32) + 0.01 * jax.random.normal(k_g, (1, D))
    beta = 0.01 * jax.random.normal(k_b, (1, D), dtype=jnp.float32)
    w = (jax.random.normal(k_w, (D, OUT_DIM), dtype=jnp.float32)
         * (1.0 / jnp.sqrt(D)))
    b = 0.01 * jax.random.normal(k_bias, (1, OUT_DIM), dtype=jnp.float32)

    out = visual_classification_forward(
        hidden, context_hidden, gamma, beta, w, b, k_drop,
        must=must, check="train", dropout_p=DROPOUT)
    out = jax.block_until_ready(out)

    assert out.shape == (B, OUT_DIM) and out.dtype == jnp.float32
    print("KERNEL_OK")
</pallas_src>

<mosaic_0001>
module attributes {stable_mosaic.version = 11 : i64} {
  func.func @kernel(%arg0: i32, %arg1: i32, %arg2: memref<2x8x768xbf16, #tpu.memory_space<vmem>>, %arg3: memref<2x8x768xbf16, #tpu.memory_space<vmem>>, %arg4: memref<1x768xf32, #tpu.memory_space<vmem>>, %arg5: memref<1x768xf32, #tpu.memory_space<vmem>>, %arg6: memref<768x128xf32, #tpu.memory_space<vmem>>, %arg7: memref<1x128xf32, #tpu.memory_space<vmem>>, %arg8: memref<2x768xf32, #tpu.memory_space<vmem>>, %arg9: memref<2x128xf32, #tpu.memory_space<vmem>>, %arg10: memref<2x768xf32, #tpu.memory_space<vmem>>, %arg11: memref<2x768xf32, #tpu.memory_space<vmem>>) attributes {dimension_semantics = [#tpu.dimension_semantics<parallel>, #tpu.dimension_semantics<arbitrary>], iteration_bounds = array<i64: 1, 1>, scalar_prefetch = 0 : i64, scratch_operands = 2 : i64, tpu.core_type = #tpu.core_type<tc>, window_params = [{transform_indices = @transform_0, window_bounds = array<i64: 2, 8, 768>}, {transform_indices = @transform_1, window_bounds = array<i64: 2, 8, 768>}, {pipeline_mode = #tpu.pipeline_mode<synchronous>, transform_indices = @transform_2, window_bounds = array<i64: 1, 768>}, {pipeline_mode = #tpu.pipeline_mode<synchronous>, transform_indices = @transform_3, window_bounds = array<i64: 1, 768>}, {pipeline_mode = #tpu.pipeline_mode<synchronous>, transform_indices = @transform_4, window_bounds = array<i64: 768, 128>}, {pipeline_mode = #tpu.pipeline_mode<synchronous>, transform_indices = @transform_5, window_bounds = array<i64: 1, 128>}, {transform_indices = @transform_6, window_bounds = array<i64: 2, 768>}, {transform_indices = @transform_7, window_bounds = array<i64: 2, 128>}]} {
    %c0_i32 = arith.constant 0 : i32
    %0 = arith.cmpi eq, %arg1, %c0_i32 : i32
    %1 = arith.extui %0 : i1 to i32
    %c0_i32_0 = arith.constant 0 : i32
    %2 = arith.cmpi ne, %1, %c0_i32_0 : i32
    scf.if %2 {
      %cst_17 = arith.constant 0.000000e+00 : f32
      %18 = vector.broadcast %cst_17 : f32 to vector<2x768xf32>
      %c0_18 = arith.constant 0 : index
      %c0_19 = arith.constant 0 : index
      %19 = vector.load %arg10[%c0_18, %c0_19] : memref<2x768xf32, #tpu.memory_space<vmem>>, vector<2x768xf32>
      tpu.vector_store %arg10[%c0_18, %c0_19], %18 {strides = array<i32>} : memref<2x768xf32, #tpu.memory_space<vmem>>, vector<2x768xf32>,
      %cst_20 = arith.constant 0.000000e+00 : f32
      %20 = vector.broadcast %cst_20 : f32 to vector<2x768xf32>
      %c0_21 = arith.constant 0 : index
      %c0_22 = arith.constant 0 : index
      %21 = vector.load %arg11[%c0_21, %c0_22] : memref<2x768xf32, #tpu.memory_space<vmem>>, vector<2x768xf32>
      tpu.vector_store %arg11[%c0_21, %c0_22], %20 {strides = array<i32>} : memref<2x768xf32, #tpu.memory_space<vmem>>, vector<2x768xf32>,
    } else {
    }
    %c0 = arith.constant 0 : index
    %c0_1 = arith.constant 0 : index
    %3 = vector.load %arg10[%c0, %c0_1] : memref<2x768xf32, #tpu.memory_space<vmem>>, vector<2x768xf32>
    %c0_2 = arith.constant 0 : index
    %c0_3 = arith.constant 0 : index
    %c0_4 = arith.constant 0 : index
    %4 = vector.load %arg2[%c0_2, %c0_3, %c0_4] : memref<2x8x768xbf16, #tpu.memory_space<vmem>>, vector<2x8x768xbf16>
    %5 = arith.extf %4 : vector<2x8x768xbf16> to vector<2x8x768xf32>
    %cst = arith.constant dense<0.000000e+00> : vector<2x768xf32>
    %6 = vector.multi_reduction <add>, %5, %cst [1] : vector<2x8x768xf32> to vector<2x768xf32>
    %7 = arith.addf %3, %6 : vector<2x768xf32>
    %c0_5 = arith.constant 0 : index
    %c0_6 = arith.constant 0 : index
    %8 = vector.load %arg10[%c0_5, %c0_6] : memref<2x768xf32, #tpu.memory_space<vmem>>, vector<2x768xf32>
    tpu.vector_store %arg10[%c0_5, %c0_6], %7 {strides = array<i32>} : memref<2x768xf32, #tpu.memory_space<vmem>>, vector<2x768xf32>,
    %c0_7 = arith.constant 0 : index
    %c0_8 = arith.constant 0 : index
    %9 = vector.load %arg11[%c0_7, %c0_8] : memref<2x768xf32, #tpu.memory_space<vmem>>, vector<2x768xf32>
    %c0_9 = arith.constant 0 : index
    %c0_10 = arith.constant 0 : index
    %c0_11 = arith.constant 0 : index
    %10 = vector.load %arg3[%c0_9, %c0_10, %c0_11] : memref<2x8x768xbf16, #tpu.memory_space<vmem>>, vector<2x8x768xbf16>
    %11 = arith.extf %10 : vector<2x8x768xbf16> to vector<2x8x768xf32>
    %cst_12 = arith.constant dense<0.000000e+00> : vector<2x768xf32>
    %12 = vector.multi_reduction <add>, %11, %cst_12 [1] : vector<2x8x768xf32> to vector<2x768xf32>
    %13 = arith.addf %9, %12 : vector<2x768xf32>
    %c0_13 = arith.constant 0 : index
    %c0_14 = arith.constant 0 : index
    %14 = vector.load %arg11[%c0_13, %c0_14] : memref<2x768xf32, #tpu.memory_space<vmem>>, vector<2x768xf32>
    tpu.vector_store %arg11[%c0_13, %c0_14], %13 {strides = array<i32>} : memref<2x768xf32, #tpu.memory_space<vmem>>, vector<2x768xf32>,
    %c0_i32_15 = arith.constant 0 : i32
    %15 = arith.cmpi eq, %arg1, %c0_i32_15 : i32
    %16 = arith.extui %15 : i1 to i32
    %c0_i32_16 = arith.constant 0 : i32
    %17 = arith.cmpi ne, %16, %c0_i32_16 : i32
    scf.if %17 {
      %c0_17 = arith.constant 0 : index
      %c0_18 = arith.constant 0 : index
      %18 = vector.load %arg4[%c0_17, %c0_18] : memref<1x768xf32, #tpu.memory_space<vmem>>, vector<1x768xf32>
      %c0_19 = arith.constant 0 : index
      %c0_20 = arith.constant 0 : index
      %19 = vector.load %arg5[%c0_19, %c0_20] : memref<1x768xf32, #tpu.memory_space<vmem>>, vector<1x768xf32>
      %c0_21 = arith.constant 0 : index
      %c0_22 = arith.constant 0 : index
      %20 = vector.load %arg10[%c0_21, %c0_22] : memref<2x768xf32, #tpu.memory_space<vmem>>, vector<2x768xf32>
      %cst_23 = arith.constant 1.250000e-01 : f32
      %21 = vector.broadcast %cst_23 : f32 to vector<2x768xf32>
      %22 = arith.mulf %20, %21 : vector<2x768xf32>
      %cst_24 = arith.constant dense<0.000000e+00> : vector<2xf32>
      %23 = vector.multi_reduction <add>, %22, %cst_24 [1] : vector<2x768xf32> to vector<2xf32>
      %24 = vector.shape_cast %23 : vector<2xf32> to vector<2x1xf32>
      %cst_25 = arith.constant 7.680000e+02 : f32
      %25 = vector.broadcast %cst_25 : f32 to vector<2x1xf32>
      %26 = arith.divf %24, %25 : vector<2x1xf32>
      %27 = vector.broadcast %26 : vector<2x1xf32> to vector<2x768xf32>
      %28 = arith.subf %22, %27 : vector<2x768xf32>
      %29 = arith.mulf %28, %28 : vector<2x768xf32>
      %cst_26 = arith.constant dense<0.000000e+00> : vector<2xf32>
      %30 = vector.multi_reduction <add>, %29, %cst_26 [1] : vector<2x768xf32> to vector<2xf32>
      %31 = vector.shape_cast %30 : vector<2xf32> to vector<2x1xf32>
      %cst_27 = arith.constant 7.680000e+02 : f32
      %32 = vector.broadcast %cst_27 : f32 to vector<2x1xf32>
      %33 = arith.divf %31, %32 : vector<2x1xf32>
      %cst_28 = arith.constant 9.99999974E-6 : f32
      %34 = vector.broadcast %cst_28 : f32 to vector<2x1xf32>
      %35 = arith.addf %33, %34 : vector<2x1xf32>
      %36 = math.rsqrt %35 : vector<2x1xf32>
      %37 = vector.broadcast %36 : vector<2x1xf32> to vector<2x768xf32>
      %38 = vector.broadcast %18 : vector<1x768xf32> to vector<2x768xf32>
      %39 = arith.mulf %37, %38 : vector<2x768xf32>
      %40 = arith.mulf %28, %39 : vector<2x768xf32>
      %41 = vector.broadcast %19 : vector<1x768xf32> to vector<2x768xf32>
      %42 = arith.addf %40, %41 : vector<2x768xf32>
      %c0_29 = arith.constant 0 : index
      %c0_30 = arith.constant 0 : index
      %43 = vector.load %arg11[%c0_29, %c0_30] : memref<2x768xf32, #tpu.memory_space<vmem>>, vector<2x768xf32>
      %cst_31 = arith.constant 1.250000e-01 : f32
      %44 = vector.broadcast %cst_31 : f32 to vector<2x768xf32>
      %45 = arith.mulf %43, %44 : vector<2x768xf32>
      %cst_32 = arith.constant dense<0.000000e+00> : vector<2xf32>
      %46 = vector.multi_reduction <add>, %45, %cst_32 [1] : vector<2x768xf32> to vector<2xf32>
      %47 = vector.shape_cast %46 : vector<2xf32> to vector<2x1xf32>
      %cst_33 = arith.constant 7.680000e+02 : f32
      %48 = vector.broadcast %cst_33 : f32 to vector<2x1xf32>
      %49 = arith.divf %47, %48 : vector<2x1xf32>
      %50 = vector.broadcast %49 : vector<2x1xf32> to vector<2x768xf32>
      %51 = arith.subf %45, %50 : vector<2x768xf32>
      %52 = arith.mulf %51, %51 : vector<2x768xf32>
      %cst_34 = arith.constant dense<0.000000e+00> : vector<2xf32>
      %53 = vector.multi_reduction <add>, %52, %cst_34 [1] : vector<2x768xf32> to vector<2xf32>
      %54 = vector.shape_cast %53 : vector<2xf32> to vector<2x1xf32>
      %cst_35 = arith.constant 7.680000e+02 : f32
      %55 = vector.broadcast %cst_35 : f32 to vector<2x1xf32>
      %56 = arith.divf %54, %55 : vector<2x1xf32>
      %cst_36 = arith.constant 9.99999974E-6 : f32
      %57 = vector.broadcast %cst_36 : f32 to vector<2x1xf32>
      %58 = arith.addf %56, %57 : vector<2x1xf32>
      %59 = math.rsqrt %58 : vector<2x1xf32>
      %60 = vector.broadcast %59 : vector<2x1xf32> to vector<2x768xf32>
      %61 = vector.broadcast %18 : vector<1x768xf32> to vector<2x768xf32>
      %62 = arith.mulf %60, %61 : vector<2x768xf32>
      %63 = arith.mulf %51, %62 : vector<2x768xf32>
      %64 = vector.broadcast %19 : vector<1x768xf32> to vector<2x768xf32>
      %65 = arith.addf %63, %64 : vector<2x768xf32>
      %cst_37 = arith.constant 6.000000e-01 : f32
      %66 = vector.broadcast %cst_37 : f32 to vector<2x768xf32>
      %67 = arith.mulf %42, %66 : vector<2x768xf32>
      %cst_38 = arith.constant 4.000000e-01 : f32
      %68 = vector.broadcast %cst_38 : f32 to vector<2x768xf32>
      %69 = arith.mulf %65, %68 : vector<2x768xf32>
      %70 = arith.addf %67, %69 : vector<2x768xf32>
      %cst_39 = arith.constant 5.000000e-01 : f32
      %71 = vector.broadcast %cst_39 : f32 to vector<2x768xf32>
      %72 = arith.mulf %70, %71 : vector<2x768xf32>
      %c0_40 = arith.constant 0 : index
      %c0_41 = arith.constant 0 : index
      %73 = vector.load %arg8[%c0_40, %c0_41] : memref<2x768xf32, #tpu.memory_space<vmem>>, vector<2x768xf32>
      %74 = arith.mulf %72, %73 : vector<2x768xf32>
      %c0_42 = arith.constant 0 : index
      %c0_43 = arith.constant 0 : index
      %75 = vector.load %arg6[%c0_42, %c0_43] : memref<768x128xf32, #tpu.memory_space<vmem>>, vector<768x128xf32>
      %cst_44 = arith.constant dense<0.000000e+00> : vector<2x128xf32>
      %76 = tpu.matmul %74, %75, %cst_44 {dimension_numbers = #tpu.dot_dimension_numbers<[1], [0], [0], [1], [0, 0, 1, 1], [], []>} : vector<2x768xf32>, vector<768x128xf32>, vector<2x128xf32> -> vector<2x128xf32>
      %c0_45 = arith.constant 0 : index
      %c0_46 = arith.constant 0 : index
      %77 = vector.load %arg7[%c0_45, %c0_46] : memref<1x128xf32, #tpu.memory_space<vmem>>, vector<1x128xf32>
      %78 = vector.broadcast %77 : vector<1x128xf32> to vector<2x128xf32>
      %79 = arith.addf %76, %78 : vector<2x128xf32>
      %c0_47 = arith.constant 0 : index
      %c0_48 = arith.constant 0 : index
      %80 = vector.load %arg9[%c0_47, %c0_48] : memref<2x128xf32, #tpu.memory_space<vmem>>, vector<2x128xf32>
      tpu.vector_store %arg9[%c0_47, %c0_48], %79 {strides = array<i32>} : memref<2x128xf32, #tpu.memory_space<vmem>>, vector<2x128xf32>,
    } else {
    }
    return
  }
  func.func @transform_0(%arg0: i32, %arg1: i32) -> (i32, i32, i32) {
    %c0_i32 = arith.constant 0 : i32
    %c0_i32_0 = arith.constant 0 : i32
    return %arg0, %arg1, %c0_i32 : i32, i32, i32
  }
  func.func @transform_1(%arg0: i32, %arg1: i32) -> (i32, i32, i32) {
    %c0_i32 = arith.constant 0 : i32
    %c0_i32_0 = arith.constant 0 : i32
    return %arg0, %arg1, %c0_i32 : i32, i32, i32
  }
  func.func @transform_2(%arg0: i32, %arg1: i32) -> (i32, i32) {
    %c0_i32 = arith.constant 0 : i32
    %c0_i32_0 = arith.constant 0 : i32
    %c0_i32_1 = arith.constant 0 : i32
    return %c0_i32, %c0_i32_0 : i32, i32
  }
  func.func @transform_3(%arg0: i32, %arg1: i32) -> (i32, i32) {
    %c0_i32 = arith.constant 0 : i32
    %c0_i32_0 = arith.constant 0 : i32
    %c0_i32_1 = arith.constant 0 : i32
    return %c0_i32, %c0_i32_0 : i32, i32
  }
  func.func @transform_4(%arg0: i32, %arg1: i32) -> (i32, i32) {
    %c0_i32 = arith.constant 0 : i32
    %c0_i32_0 = arith.constant 0 : i32
    %c0_i32_1 = arith.constant 0 : i32
    return %c0_i32, %c0_i32_0 : i32, i32
  }
  func.func @transform_5(%arg0: i32, %arg1: i32) -> (i32, i32) {
    %c0_i32 = arith.constant 0 : i32
    %c0_i32_0 = arith.constant 0 : i32
    %c0_i32_1 = arith.constant 0 : i32
    return %c0_i32, %c0_i32_0 : i32, i32
  }
  func.func @transform_6(%arg0: i32, %arg1: i32) -> (i32, i32) {
    %c0_i32 = arith.constant 0 : i32
    %c0_i32_0 = arith.constant 0 : i32
    return %arg0, %c0_i32 : i32, i32
  }
  func.func @transform_7(%arg0: i32, %arg1: i32) -> (i32, i32) {
    %c0_i32 = arith.constant 0 : i32
    %c0_i32_0 = arith.constant 0 : i32
    return %arg0, %c0_i32 : i32, i32
  }
}

</mosaic_0001>

<llo_original>
// kernel: visual_classification_forward.1
$region0: #{visual_classification_forward.1}
  #allocation0 [shape = 'u32[]', space=smem, size = 0x4, offset = 0x4, fixed_abs, tag = 'smem constant byte address 0x4 - core index']
  #allocation1 [shape = 'u32[144,128]{1,0:T(1,128)}', space=vmem, size = 0x12000, scoped, tag = 'internal scratch']
  #allocation2 [shape = 'f32[2,768]{1,0:T(2,128)}', space=vmem, size = 0x1800, scoped, tag = 'scratch operand']
  #allocation3 [shape = 'f32[2,768]{1,0:T(2,128)}', space=vmem, size = 0x1800, scoped, tag = 'scratch operand']
  %s0 = inlined_call_operand.vmem [shape: bf16[2,8,768], index: 0, kind: input, shape index: {}]
  %s1 = inlined_call_operand.vmem [shape: bf16[2,8,768], index: 1, kind: input, shape index: {}]
  %s2 = inlined_call_operand.vmem [shape: f32[1,768], index: 2, kind: input, shape index: {}]
  %s3 = inlined_call_operand.vmem [shape: f32[1,768], index: 3, kind: input, shape index: {}]
  %s4 = inlined_call_operand.vmem [shape: f32[768,128], index: 4, kind: input, shape index: {}]
  %s5 = inlined_call_operand.vmem [shape: f32[1,128], index: 5, kind: input, shape index: {}]
  %s6 = inlined_call_operand.vmem [shape: f32[2,768], index: 6, kind: input, shape index: {}]
  %s7 = inlined_call_operand.hbm [shape: f32[2,128], index: 7, kind: output, shape index: {}]
  %s8 = sld [smem:[#allocation0]]
  $region46: #{visual_classification_forward.1} parent=0
    _
  %s10 = ssub.s32 1, %s8
  %s11 = scalar_select 0, %s10, %s8
  $region1: #{visual_classification_forward.1} parent=0
    #allocation4 [shape = 'u8[1024]{0}', space=vmem, size = 0x400, scoped, tag = 'output window, operand 0, single buffered']
    #allocation5 [shape = 's32[1]{0}', space=sflag, size = 0x4, scoped, tag = 'scoped memory for visual_classification_forward.1']
    %12 = vsyncpa [#allocation5], 0
    // Predicated region
    $region2: #{visual_classification_forward.1} parent=1 // pred_check
      _
    $region3: #{visual_classification_forward.1} parent=1 // pred_check_branch
      %14 = sbr.rel (0) target = $region5
    $region4: #{visual_classification_forward.1} parent=1 // pred_region
      _
    $region5: #{visual_classification_forward.1} parent=1 // pred_fallthru
      _
    // Predicated region
    $region6: #{visual_classification_forward.1} parent=1 // pred_check
      _
    $region7: #{visual_classification_forward.1} parent=1 // pred_check_branch
      %16 = sbr.rel (0) target = $region9
    $region8: #{visual_classification_forward.1} parent=1 // pred_region
      _
    $region9: #{visual_classification_forward.1} parent=1 // pred_fallthru
      _
    // Predicated region
    $region10: #{visual_classification_forward.1} parent=1 // pred_check
      _
    $region11: #{visual_classification_forward.1} parent=1 // pred_check_branch
      %18 = sbr.rel (0) target = $region13
    $region12: #{visual_classification_forward.1} parent=1 // pred_region
      _
    $region13: #{visual_classification_forward.1} parent=1 // pred_fallthru
      _
    // Predicated region
    $region14: #{visual_classification_forward.1} parent=1 // pred_check
      _
    $region15: #{visual_classification_forward.1} parent=1 // pred_check_branch
      %20 = sbr.rel (0) target = $region17
    $region16: #{visual_classification_forward.1} parent=1 // pred_region
      _
    $region17: #{visual_classification_forward.1} parent=1 // pred_fallthru
      _
    // Predicated region
    $region18: #{visual_classification_forward.1} parent=1 // pred_check
      _
    $region19: #{visual_classification_forward.1} parent=1 // pred_check_branch
      %22 = sbr.rel (0) target = $region21
    $region20: #{visual_classification_forward.1} parent=1 // pred_region
      _
    $region21: #{visual_classification_forward.1} parent=1 // pred_fallthru
      _
    // Predicated region
    $region22: #{visual_classification_forward.1} parent=1 // pred_check
      _
    $region23: #{visual_classification_forward.1} parent=1 // pred_check_branch
      %24 = sbr.rel (0) target = $region25
    $region24: #{visual_classification_forward.1} parent=1 // pred_region
      _
    $region25: #{visual_classification_forward.1} parent=1 // pred_fallthru
      _
    // Predicated region
    $region26: #{visual_classification_forward.1} parent=1 // pred_check
      _
    $region27: #{visual_classification_forward.1} parent=1 // pred_check_branch
      %26 = sbr.rel (0) target = $region29
    $region28: #{visual_classification_forward.1} parent=1 // pred_region
      _
    $region29: #{visual_classification_forward.1} parent=1 // pred_fallthru
      _
    %p27 = scmp.eq.s32.totalorder 0, 0
    // Predicated region
    $region30: #{visual_classification_forward.1} parent=1 // pred_check
      %p28 = pneg %p27
    $region31: #{visual_classification_forward.1} parent=1 // pred_check_branch
      %30 = sbr.rel (%p28) target = $region33
    $region32: #{visual_classification_forward.1} parent=1 // pred_region
      %31 = vst [vmem:[#allocation2] sm:$0xff] 0.0
      %32 = vst [vmem:[#allocation2 + $0x8] sm:$0xf] 0.0
      %33 = vst [vmem:[#allocation3] sm:$0xff] 0.0
      %34 = vst [vmem:[#allocation3 + $0x8] sm:$0xf] 0.0
    $region33: #{visual_classification_forward.1} parent=1 // pred_fallthru
      _
    %v35 = vld [vmem:[#allocation2] sm:$0xff]
    %v36 = vld [vmem:[#allocation2 + $0x8] sm:$0xf]
    %v37 = vld [vmem:[%s0] sm:$0xff]
    %v38 = vld [vmem:[%s0 + $0x8] sm:$0xff]
    %v39 = vld [vmem:[%s0 + $0x10] sm:$0xff]
    %v40 = vld [vmem:[%s0 + $0x18] sm:$0xff]
    %v41 = vld [vmem:[%s0 + $0x20] sm:$0xff]
    %v42 = vld [vmem:[%s0 + $0x28] sm:$0xff]
    %v43 = vunpack.c.l.bf16 %v37
    %v44 = vunpack.c.h.bf16 %v37
    %v45 = vunpack.c.l.bf16 %v38
    %v46 = vunpack.c.h.bf16 %v38
    %v47 = vunpack.c.l.bf16 %v39
    %v48 = vunpack.c.h.bf16 %v39
    %v49 = vunpack.c.l.bf16 %v40
    %v50 = vunpack.c.h.bf16 %v40
    %v51 = vunpack.c.l.bf16 %v41
    %v52 = vunpack.c.h.bf16 %v41
    %v53 = vunpack.c.l.bf16 %v42
    %v54 = vunpack.c.h.bf16 %v42
    %v55 = vrot.slane %v43, 4
    %v56 = vadd.f32 %v43, %v55
    %v57 = vrot.slane %v56, 2
    %v58 = vadd.f32 %v56, %v57
    %v59 = vrot.slane %v58, 1
    %v60 = vadd.f32 %v58, %v59
    %v61 = vrot.slane %v44, 4
    %v62 = vadd.f32 %v44, %v61
    %v63 = vrot.slane %v62, 2
    %v64 = vadd.f32 %v62, %v63
    %v65 = vrot.slane %v64, 1
    %v66 = vadd.f32 %v64, %v65
    %v67 = vrot.slane %v45, 4
    %v68 = vadd.f32 %v45, %v67
    %v69 = vrot.slane %v68, 2
    %v70 = vadd.f32 %v68, %v69
    %v71 = vrot.slane %v70, 1
    %v72 = vadd.f32 %v70, %v71
    %v73 = vrot.slane %v46, 4
    %v74 = vadd.f32 %v46, %v73
    %v75 = vrot.slane %v74, 2
    %v76 = vadd.f32 %v74, %v75
    %v77 = vrot.slane %v76, 1
    %v78 = vadd.f32 %v76, %v77
    %v79 = vrot.slane %v47, 4
    %v80 = vadd.f32 %v47, %v79
    %v81 = vrot.slane %v80, 2
    %v82 = vadd.f32 %v80, %v81
    %v83 = vrot.slane %v82, 1
    %v84 = vadd.f32 %v82, %v83
    %v85 = vrot.slane %v48, 4
    %v86 = vadd.f32 %v48, %v85
    %v87 = vrot.slane %v86, 2
    %v88 = vadd.f32 %v86, %v87
    %v89 = vrot.slane %v88, 1
    %v90 = vadd.f32 %v88, %v89
    %v91 = vrot.slane %v49, 4
    %v92 = vadd.f32 %v49, %v91
    %v93 = vrot.slane %v92, 2
    %v94 = vadd.f32 %v92, %v93
    %v95 = vrot.slane %v94, 1
    %v96 = vadd.f32 %v94, %v95
    %v97 = vrot.slane %v50, 4
    %v98 = vadd.f32 %v50, %v97
    %v99 = vrot.slane %v98, 2
    %v100 = vadd.f32 %v98, %v99
    %v101 = vrot.slane %v100, 1
    %v102 = vadd.f32 %v100, %v101
    %v103 = vrot.slane %v51, 4
    %v104 = vadd.f32 %v51, %v103
    %v105 = vrot.slane %v104, 2
    %v106 = vadd.f32 %v104, %v105
    %v107 = vrot.slane %v106, 1
    %v108 = vadd.f32 %v106, %v107
    %v109 = vrot.slane %v52, 4
    %v110 = vadd.f32 %v52, %v109
    %v111 = vrot.slane %v110, 2
    %v112 = vadd.f32 %v110, %v111
    %v113 = vrot.slane %v112, 1
    %v114 = vadd.f32 %v112, %v113
    %v115 = vrot.slane %v53, 4
    %v116 = vadd.f32 %v53, %v115
    %v117 = vrot.slane %v116, 2
    %v118 = vadd.f32 %v116, %v117
    %v119 = vrot.slane %v118, 1
    %v120 = vadd.f32 %v118, %v119
    %v121 = vrot.slane %v54, 4
    %v122 = vadd.f32 %v54, %v121
    %v123 = vrot.slane %v122, 2
    %v124 = vadd.f32 %v122, %v123
    %v125 = vrot.slane %v124, 1
    %v126 = vadd.f32 %v124, %v125
    %v139 = vcombine.low %v60, %v66
    %v140 = vcombine.low %v72, %v78
    %v142 = vunpack.c.l.s4 1983009808
    %v143 = vunpack.c.0.s8 %v142
    %v144 = vlaneseq
    %v145 = vshrl.u32 %v144, 7
    %v146 = vsub.s32 %v143, %v145
    %v147 = vrot.slane %v139, %v146
    %v149 = vunpack.c.l.s4 1983009808
    %v150 = vunpack.c.0.s8 %v149
    %v151 = vlaneseq
    %v152 = vshrl.u32 %v151, 7
    %v153 = vsub.s32 %v150, %v152
    %v154 = vrot.slane %v140, %v153
    %v155 = vcombine.low %v147, %v154
    %v156 = vcombine.low %v84, %v90
    %v158 = vunpack.c.l.s4 1983009808
    %v159 = vunpack.c.0.s8 %v158
    %v160 = vlaneseq
    %v161 = vshrl.u32 %v160, 7
    %v162 = vsub.s32 %v159, %v161
    %v163 = vrot.slane %v156, %v162
    %v164 = vcombine.low %v96, %v102
    %v165 = vcombine.low %v108, %v114
    %v167 = vunpack.c.l.s4 1983009808
    %v168 = vunpack.c.0.s8 %v167
    %v169 = vlaneseq
    %v170 = vshrl.u32 %v169, 7
    %v171 = vsub.s32 %v168, %v170
    %v172 = vrot.slane %v164, %v171
    %v174 = vunpack.c.l.s4 1983009808
    %v175 = vunpack.c.0.s8 %v174
    %v176 = vlaneseq
    %v177 = vshrl.u32 %v176, 7
    %v178 = vsub.s32 %v175, %v177
    %v179 = vrot.slane %v165, %v178
    %v180 = vcombine.low %v172, %v179
    %v181 = vcombine.low %v120, %v126
    %v183 = vunpack.c.l.s4 1983009808
    %v184 = vunpack.c.0.s8 %v183
    %v185 = vlaneseq
    %v186 = vshrl.u32 %v185, 7
    %v187 = vsub.s32 %v184, %v186
    %v188 = vrot.slane %v181, %v187
    %vm189 = vcmask 1044484
    %v190 = vsel %vm189, %v155, %v155
    %vm191 = vcmask 1046534
    %v192 = vsel %vm191, %v155, %v190
    %v193 = vrot.slane %v180, 7
    %vm194 = vcmask 1041409
    %v195 = vsel %vm194, %v193, %v192
    %vm196 = vcmask 1043459
    %v197 = vsel %vm196, %v193, %v195
    %vm198 = vcmask 1045509
    %v199 = vsel %vm198, %v193, %v197
    %vm200 = vcmask 1047559
    %v201 = vsel %vm200, %v193, %v199
    %v202 = vsel %vm189, %v163, %v163
    %v203 = vsel %vm191, %v163, %v202
    %v204 = vrot.slane %v188, 7
    %v205 = vsel %vm194, %v204, %v203
    %v206 = vsel %vm196, %v204, %v205
    %v207 = vsel %vm198, %v204, %v206
    %v208 = vsel %vm200, %v204, %v207
    %v211 = vadd.f32 %v35, %v201
    %v212 = vadd.f32 %v36, %v208
    %213 = vst [vmem:[#allocation2] sm:$0xff] %v211
    %214 = vst [vmem:[#allocation2 + $0x8] sm:$0xf] %v212
    %v215 = vld [vmem:[#allocation3] sm:$0xff]
    %v216 = vld [vmem:[#allocation3 + $0x8] sm:$0xf]
    %v217 = vld [vmem:[%s1] sm:$0xff]
    %v218 = vld [vmem:[%s1 + $0x8] sm:$0xff]
    %v219 = vld [vmem:[%s1 + $0x10] sm:$0xff]
    %v220 = vld [vmem:[%s1 + $0x18] sm:$0xff]
    %v221 = vld [vmem:[%s1 + $0x20] sm:$0xff]
    %v222 = vld [vmem:[%s1 + $0x28] sm:$0xff]
    %v223 = vunpack.c.l.bf16 %v217
    %v224 = vunpack.c.h.bf16 %v217
    %v225 = vunpack.c.l.bf16 %v218
    %v226 = vunpack.c.h.bf16 %v218
    %v227 = vunpack.c.l.bf16 %v219
    %v228 = vunpack.c.h.bf16 %v219
    %v229 = vunpack.c.l.bf16 %v220
    %v230 = vunpack.c.h.bf16 %v220
    %v231 = vunpack.c.l.bf16 %v221
    %v232 = vunpack.c.h.bf16 %v221
    %v233 = vunpack.c.l.bf16 %v222
    %v234 = vunpack.c.h.bf16 %v222
    %v235 = vrot.slane %v223, 4
    %v236 = vadd.f32 %v223, %v235
    %v237 = vrot.slane %v236, 2
    %v238 = vadd.f32 %v236, %v237
    %v239 = vrot.slane %v238, 1
    %v240 = vadd.f32 %v238, %v239
    %v241 = vrot.slane %v224, 4
    %v242 = vadd.f32 %v224, %v241
    %v243 = vrot.slane %v242, 2
    %v244 = vadd.f32 %v242, %v243
    %v245 = vrot.slane %v244, 1
    %v246 = vadd.f32 %v244, %v245
    %v247 = vrot.slane %v225, 4
    %v248 = vadd.f32 %v225, %v247
    %v249 = vrot.slane %v248, 2
    %v250 = vadd.f32 %v248, %v249
    %v251 = vrot.slane %v250, 1
    %v252 = vadd.f32 %v250, %v251
    %v253 = vrot.slane %v226, 4
    %v254 = vadd.f32 %v226, %v253
    %v255 = vrot.slane %v254, 2
    %v256 = vadd.f32 %v254, %v255
    %v257 = vrot.slane %v256, 1
    %v258 = vadd.f32 %v256, %v257
    %v259 = vrot.slane %v227, 4
    %v260 = vadd.f32 %v227, %v259
    %v261 = vrot.slane %v260, 2
    %v262 = vadd.f32 %v260, %v261
    %v263 = vrot.slane %v262, 1
    %v264 = vadd.f32 %v262, %v263
    %v265 = vrot.slane %v228, 4
    %v266 = vadd.f32 %v228, %v265
    %v267 = vrot.slane %v266, 2
    %v268 = vadd.f32 %v266, %v267
    %v269 = vrot.slane %v268, 1
    %v270 = vadd.f32 %v268, %v269
    %v271 = vrot.slane %v229, 4
    %v272 = vadd.f32 %v229, %v271
    %v273 = vrot.slane %v272, 2
    %v274 = vadd.f32 %v272, %v273
    %v275 = vrot.slane %v274, 1
    %v276 = vadd.f32 %v274, %v275
    %v277 = vrot.slane %v230, 4
    %v278 = vadd.f32 %v230, %v277
    %v279 = vrot.slane %v278, 2
    %v280 = vadd.f32 %v278, %v279
    %v281 = vrot.slane %v280, 1
    %v282 = vadd.f32 %v280, %v281
    %v283 = vrot.slane %v231, 4
    %v284 = vadd.f32 %v231, %v283
    %v285 = vrot.slane %v284, 2
    %v286 = vadd.f32 %v284, %v285
    %v287 = vrot.slane %v286, 1
    %v288 = vadd.f32 %v286, %v287
    %v289 = vrot.slane %v232, 4
    %v290 = vadd.f32 %v232, %v289
    %v291 = vrot.slane %v290, 2
    %v292 = vadd.f32 %v290, %v291
    %v293 = vrot.slane %v292, 1
    %v294 = vadd.f32 %v292, %v293
    %v295 = vrot.slane %v233, 4
    %v296 = vadd.f32 %v233, %v295
    %v297 = vrot.slane %v296, 2
    %v298 = vadd.f32 %v296, %v297
    %v299 = vrot.slane %v298, 1
    %v300 = vadd.f32 %v298, %v299
    %v301 = vrot.slane %v234, 4
    %v302 = vadd.f32 %v234, %v301
    %v303 = vrot.slane %v302, 2
    %v304 = vadd.f32 %v302, %v303
    %v305 = vrot.slane %v304, 1
    %v306 = vadd.f32 %v304, %v305
    %v319 = vcombine.low %v240, %v246
    %v320 = vcombine.low %v252, %v258
    %v322 = vunpack.c.l.s4 1983009808
    %v323 = vunpack.c.0.s8 %v322
    %v324 = vlaneseq
    %v325 = vshrl.u32 %v324, 7
    %v326 = vsub.s32 %v323, %v325
    %v327 = vrot.slane %v319, %v326
    %v329 = vunpack.c.l.s4 1983009808
    %v330 = vunpack.c.0.s8 %v329
    %v331 = vlaneseq
    %v332 = vshrl.u32 %v331, 7
    %v333 = vsub.s32 %v330, %v332
    %v334 = vrot.slane %v320, %v333
    %v335 = vcombine.low %v327, %v334
    %v336 = vcombine.low %v264, %v270
    %v338 = vunpack.c.l.s4 1983009808
    %v339 = vunpack.c.0.s8 %v338
    %v340 = vlaneseq
    %v341 = vshrl.u32 %v340, 7
    %v342 = vsub.s32 %v339, %v341
    %v343 = vrot.slane %v336, %v342
    %v344 = vcombine.low %v276, %v282
    %v345 = vcombine.low %v288, %v294
    %v347 = vunpack.c.l.s4 1983009808
    %v348 = vunpack.c.0.s8 %v347
    %v349 = vlaneseq
    %v350 = vshrl.u32 %v349, 7
    %v351 = vsub.s32 %v348, %v350
    %v352 = vrot.slane %v344, %v351
    %v354 = vunpack.c.l.s4 1983009808
    %v355 = vunpack.c.0.s8 %v354
    %v356 = vlaneseq
    %v357 = vshrl.u32 %v356, 7
    %v358 = vsub.s32 %v355, %v357
    %v359 = vrot.slane %v345, %v358
    %v360 = vcombine.low %v352, %v359
    %v361 = vcombine.low %v300, %v306
    %v363 = vunpack.c.l.s4 1983009808
    %v364 = vunpack.c.0.s8 %v363
    %v365 = vlaneseq
    %v366 = vshrl.u32 %v365, 7
    %v367 = vsub.s32 %v364, %v366
    %v368 = vrot.slane %v361, %v367
    %v369 = vsel %vm189, %v335, %v335
    %v370 = vsel %vm191, %v335, %v369
    %v371 = vrot.slane %v360, 7
    %v372 = vsel %vm194, %v371, %v370
    %v373 = vsel %vm196, %v371, %v372
    %v374 = vsel %vm198, %v371, %v373
    %v375 = vsel %vm200, %v371, %v374
    %v376 = vsel %vm189, %v343, %v343
    %v377 = vsel %vm191, %v343, %v376
    %v378 = vrot.slane %v368, 7
    %v379 = vsel %vm194, %v378, %v377
    %v380 = vsel %vm196, %v378, %v379
    %v381 = vsel %vm198, %v378, %v380
    %v382 = vsel %vm200, %v378, %v381
    %v385 = vadd.f32 %v215, %v375
    %v386 = vadd.f32 %v216, %v382
    %387 = vst [vmem:[#allocation3] sm:$0xff] %v385
    %388 = vst [vmem:[#allocation3 + $0x8] sm:$0xf] %v386
    // Predicated region
    $region34: #{visual_classification_forward.1} parent=1 // pred_check
      %p389 = pneg %p27
    $region35: #{visual_classification_forward.1} parent=1 // pred_check_branch
      %391 = sbr.rel (%p389) target = $region37
    $region36: #{visual_classification_forward.1} parent=1 // pred_region
      %v392 = vld [vmem:[%s2] sm:$0x3f]
      %v393 = vld [vmem:[%s3] sm:$0x3f]
      %v394 = vld [vmem:[#allocation2] sm:$0xff]
      %v395 = vld [vmem:[#allocation2 + $0x8] sm:$0xf]
      %v396 = vmul.f32 %v394, 0.125
      %v397 = vmul.f32 %v395, 0.125
      %v400 = vcombine.high %v396, %v396
      %v402 = vunpack.c.l.s4 1983009808
      %v403 = vunpack.c.0.s8 %v402
      %v404 = vlaneseq
      %v405 = vshrl.u32 %v404, 7
      %v406 = vsub.s32 %v403, %v405
      %v407 = vrot.slane %v396, %v406
      %v409 = vunpack.c.l.s4 1983009808
      %v410 = vunpack.c.0.s8 %v409
      %v411 = vlaneseq
      %v412 = vshrl.u32 %v411, 7
      %v413 = vsub.s32 %v410, %v412
      %v414 = vrot.slane %v400, %v413
      %v415 = vcombine.high %v407, %v407
      %v416 = vcombine.high %v414, %v414
      %v418 = vunpack.c.l.s4 1983009808
      %v419 = vunpack.c.0.s8 %v418
      %v420 = vlaneseq
      %v421 = vshrl.u32 %v420, 7
      %v422 = vsub.s32 %v419, %v421
      %v423 = vrot.slane %v397, %v422
      %v424 = vcombine.high %v423, %v423
      %vm431 = vcmask 1041408
      %v432 = vsel %vm431, %v407, 0.0
      %v433 = vsel %vm431, %v415, 0.0
      %v434 = vadd.f32 %v432, %v433
      %v435 = vsel %vm431, %v414, 0.0
      %v436 = vadd.f32 %v434, %v435
      %v437 = vsel %vm431, %v416, 0.0
      %v438 = vadd.f32 %v436, %v437
      %v439 = vsel %vm431, %v423, 0.0
      %v440 = vadd.f32 %v438, %v439
      %v441 = vsel %vm431, %v424, 0.0
      %v442 = vadd.f32 %v440, %v441
      %443 = vadd.xlane.f32.xlu0 %v442
      %v444 = vpop.xlane.xlu0 %443
      %v445 = vrcp.pop 768.0
      %v446 = vmul.f32 %v444, %v445
      %v449 = vunpack.c.l.s4 269488144
      %v450 = vunpack.c.0.s8 %v449
      %v451 = vlaneseq
      %v452 = vshrl.u32 %v451, 7
      %v453 = vsub.s32 %v450, %v452
      %v454 = vrot.slane %v446, %v453
      %v456 = vsub.f32 %v396, %v454
      %v457 = vsub.f32 %v397, %v454
      %v458 = vmul.f32 %v456, %v456
      %v459 = vmul.f32 %v457, %v457
      %v462 = vcombine.high %v458, %v458
      %v464 = vunpack.c.l.s4 1983009808
      %v465 = vunpack.c.0.s8 %v464
      %v466 = vlaneseq
      %v467 = vshrl.u32 %v466, 7
      %v468 = vsub.s32 %v465, %v467
      %v469 = vrot.slane %v458, %v468
      %v471 = vunpack.c.l.s4 1983009808
      %v472 = vunpack.c.0.s8 %v471
      %v473 = vlaneseq
      %v474 = vshrl.u32 %v473, 7
      %v475 = vsub.s32 %v472, %v474
      %v476 = vrot.slane %v462, %v475
      %v477 = vcombine.high %v469, %v469
      %v478 = vcombine.high %v476, %v476
      %v480 = vunpack.c.l.s4 1983009808
      %v481 = vunpack.c.0.s8 %v480
      %v482 = vlaneseq
      %v483 = vshrl.u32 %v482, 7
      %v484 = vsub.s32 %v481, %v483
      %v485 = vrot.slane %v459, %v484
      %v486 = vcombine.high %v485, %v485
      %v493 = vsel %vm431, %v469, 0.0
      %v494 = vsel %vm431, %v477, 0.0
      %v495 = vadd.f32 %v493, %v494
      %v496 = vsel %vm431, %v476, 0.0
      %v497 = vadd.f32 %v495, %v496
      %v498 = vsel %vm431, %v478, 0.0
      %v499 = vadd.f32 %v497, %v498
      %v500 = vsel %vm431, %v485, 0.0
      %v501 = vadd.f32 %v499, %v500
      %v502 = vsel %vm431, %v486, 0.0
      %v503 = vadd.f32 %v501, %v502
      %504 = vadd.xlane.f32.xlu0 %v503
      %v505 = vpop.xlane.xlu0 %504
      %v506 = vmul.f32 %v505, %v445
      %v507 = vadd.f32 %v506, 1e-05
      %v508 = vrsqrt.pop %v507
      %v510 = vlaneseq
      %v511 = vshrl.u32 %v510, 7
      %v512 = vsub.s32 0, %v511
      %v513 = vrot.slane %v392, %v512
      %v514 = vlaneseq
      %v515 = vshrl.u32 %v514, 7
      %v516 = vsub.s32 1, %v515
      %v517 = vrot.slane %v392, %v516
      %v518 = vlaneseq
      %v519 = vshrl.u32 %v518, 7
      %v520 = vsub.s32 2, %v519
      %v521 = vrot.slane %v392, %v520
      %v522 = vlaneseq
      %v523 = vshrl.u32 %v522, 7
      %v524 = vsub.s32 3, %v523
      %v525 = vrot.slane %v392, %v524
      %v526 = vlaneseq
      %v527 = vshrl.u32 %v526, 7
      %v528 = vsub.s32 4, %v527
      %v529 = vrot.slane %v392, %v528
      %v530 = vlaneseq
      %v531 = vshrl.u32 %v530, 7
      %v532 = vsub.s32 5, %v531
      %v533 = vrot.slane %v392, %v532
      %v540 = vmul.f32 %v508, %v513
      %v541 = vmul.f32 %v508, %v517
      %v542 = vmul.f32 %v508, %v521
      %v543 = vmul.f32 %v508, %v525
      %v544 = vmul.f32 %v508, %v529
      %v545 = vmul.f32 %v508, %v533
      %v552 = vcombine.low %v540, %v541
      %v553 = vcombine.low %v542, %v543
      %v555 = vunpack.c.l.s4 1983009808
      %v556 = vunpack.c.0.s8 %v555
      %v557 = vlaneseq
      %v558 = vshrl.u32 %v557, 7
      %v559 = vsub.s32 %v556, %v558
      %v560 = vrot.slane %v552, %v559
      %v562 = vunpack.c.l.s4 1983009808
      %v563 = vunpack.c.0.s8 %v562
      %v564 = vlaneseq
      %v565 = vshrl.u32 %v564, 7
      %v566 = vsub.s32 %v563, %v565
      %v567 = vrot.slane %v553, %v566
      %v568 = vcombine.low %v560, %v567
      %v569 = vcombine.low %v544, %v545
      %v571 = vunpack.c.l.s4 1983009808
      %v572 = vunpack.c.0.s8 %v571
      %v573 = vlaneseq
      %v574 = vshrl.u32 %v573, 7
      %v575 = vsub.s32 %v572, %v574
      %v576 = vrot.slane %v569, %v575
      %v579 = vmul.f32 %v456, %v568
      %v580 = vmul.f32 %v457, %v576
      %v582 = vlaneseq
      %v583 = vshrl.u32 %v582, 7
      %v584 = vsub.s32 0, %v583
      %v585 = vrot.slane %v393, %v584
      %v586 = vlaneseq
      %v587 = vshrl.u32 %v586, 7
      %v588 = vsub.s32 1, %v587
      %v589 = vrot.slane %v393, %v588
      %v590 = vlaneseq
      %v591 = vshrl.u32 %v590, 7
      %v592 = vsub.s32 2, %v591
      %v593 = vrot.slane %v393, %v592
      %v594 = vlaneseq
      %v595 = vshrl.u32 %v594, 7
      %v596 = vsub.s32 3, %v595
      %v597 = vrot.slane %v393, %v596
      %v598 = vlaneseq
      %v599 = vshrl.u32 %v598, 7
      %v600 = vsub.s32 4, %v599
      %v601 = vrot.slane %v393, %v600
      %v602 = vlaneseq
      %v603 = vshrl.u32 %v602, 7
      %v604 = vsub.s32 5, %v603
      %v605 = vrot.slane %v393, %v604
      %v606 = vcombine.low %v585, %v589
      %v607 = vcombine.low %v593, %v597
      %v609 = vunpack.c.l.s4 1983009808
      %v610 = vunpack.c.0.s8 %v609
      %v611 = vlaneseq
      %v612 = vshrl.u32 %v611, 7
      %v613 = vsub.s32 %v610, %v612
      %v614 = vrot.slane %v606, %v613
      %v616 = vunpack.c.l.s4 1983009808
      %v617 = vunpack.c.0.s8 %v616
      %v618 = vlaneseq
      %v619 = vshrl.u32 %v618, 7
      %v620 = vsub.s32 %v617, %v619
      %v621 = vrot.slane %v607, %v620
      %v622 = vcombine.low %v614, %v621
      %v623 = vcombine.low %v601, %v605
      %v625 = vunpack.c.l.s4 1983009808
      %v626 = vunpack.c.0.s8 %v625
      %v627 = vlaneseq
      %v628 = vshrl.u32 %v627, 7
      %v629 = vsub.s32 %v626, %v628
      %v630 = vrot.slane %v623, %v629
      %v633 = vadd.f32 %v579, %v622
      %v634 = vadd.f32 %v580, %v630
      %v635 = vld [vmem:[#allocation3] sm:$0xff]
      %v636 = vld [vmem:[#allocation3 + $0x8] sm:$0xf]
      %v637 = vmul.f32 %v635, 0.125
      %v638 = vmul.f32 %v636, 0.125
      %v641 = vcombine.high %v637, %v637
      %v643 = vunpack.c.l.s4 1983009808
      %v644 = vunpack.c.0.s8 %v643
      %v645 = vlaneseq
      %v646 = vshrl.u32 %v645, 7
      %v647 = vsub.s32 %v644, %v646
      %v648 = vrot.slane %v637, %v647
      %v650 = vunpack.c.l.s4 1983009808
      %v651 = vunpack.c.0.s8 %v650
      %v652 = vlaneseq
      %v653 = vshrl.u32 %v652, 7
      %v654 = vsub.s32 %v651, %v653
      %v655 = vrot.slane %v641, %v654
      %v656 = vcombine.high %v648, %v648
      %v657 = vcombine.high %v655, %v655
      %v659 = vunpack.c.l.s4 1983009808
      %v660 = vunpack.c.0.s8 %v659
      %v661 = vlaneseq
      %v662 = vshrl.u32 %v661, 7
      %v663 = vsub.s32 %v660, %v662
      %v664 = vrot.slane %v638, %v663
      %v665 = vcombine.high %v664, %v664
      %v672 = vsel %vm431, %v648, 0.0
      %v673 = vsel %vm431, %v656, 0.0
      %v674 = vadd.f32 %v672, %v673
      %v675 = vsel %vm431, %v655, 0.0
      %v676 = vadd.f32 %v674, %v675
      %v677 = vsel %vm431, %v657, 0.0
      %v678 = vadd.f32 %v676, %v677
      %v679 = vsel %vm431, %v664, 0.0
      %v680 = vadd.f32 %v678, %v679
      %v681 = vsel %vm431, %v665, 0.0
      %v682 = vadd.f32 %v680, %v681
      %683 = vadd.xlane.f32.xlu0 %v682
      %v684 = vpop.xlane.xlu0 %683
      %v685 = vmul.f32 %v684, %v445
      %v688 = vunpack.c.l.s4 269488144
      %v689 = vunpack.c.0.s8 %v688
      %v690 = vlaneseq
      %v691 = vshrl.u32 %v690, 7
      %v692 = vsub.s32 %v689, %v691
      %v693 = vrot.slane %v685, %v692
      %v695 = vsub.f32 %v637, %v693
      %v696 = vsub.f32 %v638, %v693
      %v697 = vmul.f32 %v695, %v695
      %v698 = vmul.f32 %v696, %v696
      %v701 = vcombine.high %v697, %v697
      %v703 = vunpack.c.l.s4 1983009808
      %v704 = vunpack.c.0.s8 %v703
      %v705 = vlaneseq
      %v706 = vshrl.u32 %v705, 7
      %v707 = vsub.s32 %v704, %v706
      %v708 = vrot.slane %v697, %v707
      %v710 = vunpack.c.l.s4 1983009808
      %v711 = vunpack.c.0.s8 %v710
      %v712 = vlaneseq
      %v713 = vshrl.u32 %v712, 7
      %v714 = vsub.s32 %v711, %v713
      %v715 = vrot.slane %v701, %v714
      %v716 = vcombine.high %v708, %v708
      %v717 = vcombine.high %v715, %v715
      %v719 = vunpack.c.l.s4 1983009808
      %v720 = vunpack.c.0.s8 %v719
      %v721 = vlaneseq
      %v722 = vshrl.u32 %v721, 7
      %v723 = vsub.s32 %v720, %v722
      %v724 = vrot.slane %v698, %v723
      %v725 = vcombine.high %v724, %v724
      %v732 = vsel %vm431, %v708, 0.0
      %v733 = vsel %vm431, %v716, 0.0
      %v734 = vadd.f32 %v732, %v733
      %v735 = vsel %vm431, %v715, 0.0
      %v736 = vadd.f32 %v734, %v735
      %v737 = vsel %vm431, %v717, 0.0
      %v738 = vadd.f32 %v736, %v737
      %v739 = vsel %vm431, %v724, 0.0
      %v740 = vadd.f32 %v738, %v739
      %v741 = vsel %vm431, %v725, 0.0
      %v742 = vadd.f32 %v740, %v741
      %743 = vadd.xlane.f32.xlu0 %v742
      %v744 = vpop.xlane.xlu0 %743
      %v745 = vmul.f32 %v744, %v445
      %v746 = vadd.f32 %v745, 1e-05
      %v747 = vrsqrt.pop %v746
      %v748 = vmul.f32 %v747, %v513
      %v749 = vmul.f32 %v747, %v517
      %v750 = vmul.f32 %v747, %v521
      %v751 = vmul.f32 %v747, %v525
      %v752 = vmul.f32 %v747, %v529
      %v753 = vmul.f32 %v747, %v533
      %v760 = vcombine.low %v748, %v749
      %v761 = vcombine.low %v750, %v751
      %v763 = vunpack.c.l.s4 1983009808
      %v764 = vunpack.c.0.s8 %v763
      %v765 = vlaneseq
      %v766 = vshrl.u32 %v765, 7
      %v767 = vsub.s32 %v764, %v766
      %v768 = vrot.slane %v760, %v767
      %v770 = vunpack.c.l.s4 1983009808
      %v771 = vunpack.c.0.s8 %v770
      %v772 = vlaneseq
      %v773 = vshrl.u32 %v772, 7
      %v774 = vsub.s32 %v771, %v773
      %v775 = vrot.slane %v761, %v774
      %v776 = vcombine.low %v768, %v775
      %v777 = vcombine.low %v752, %v753
      %v779 = vunpack.c.l.s4 1983009808
      %v780 = vunpack.c.0.s8 %v779
      %v781 = vlaneseq
      %v782 = vshrl.u32 %v781, 7
      %v783 = vsub.s32 %v780, %v782
      %v784 = vrot.slane %v777, %v783
      %v787 = vmul.f32 %v695, %v776
      %v788 = vmul.f32 %v696, %v784
      %v789 = vadd.f32 %v787, %v622
      %v790 = vadd.f32 %v788, %v630
      %v791 = vmul.f32 %v633, 0.6
      %v792 = vmul.f32 %v634, 0.6
      %v793 = vmul.f32 %v789, 0.4
      %v794 = vmul.f32 %v790, 0.4
      %v795 = vadd.f32 %v791, %v793
      %v796 = vadd.f32 %v792, %v794
      %v797 = vmul.f32 %v795, 0.5
      %v798 = vmul.f32 %v796, 0.5
      %v799 = vld [vmem:[%s6] sm:$0xff]
      %v800 = vld [vmem:[%s6 + $0x8] sm:$0xf]
      %v801 = vmul.f32 %v797, %v799
      %v802 = vmul.f32 %v798, %v800
      %v803 = vld [vmem:[%s4] sm:$0xff]
      %v804 = vld [vmem:[%s4 + $0x8] sm:$0xff]
      %v805 = vld [vmem:[%s4 + $0x10] sm:$0xff]
      %v806 = vld [vmem:[%s4 + $0x18] sm:$0xff]
      %v807 = vld [vmem:[%s4 + $0x20] sm:$0xff]
      %v808 = vld [vmem:[%s4 + $0x28] sm:$0xff]
      %v809 = vld [vmem:[%s4 + $0x30] sm:$0xff]
      %v810 = vld [vmem:[%s4 + $0x38] sm:$0xff]
      %v811 = vld [vmem:[%s4 + $0x40] sm:$0xff]
      %v812 = vld [vmem:[%s4 + $0x48] sm:$0xff]
      %v813 = vld [vmem:[%s4 + $0x50] sm:$0xff]
      %v814 = vld [vmem:[%s4 + $0x58] sm:$0xff]
      %v815 = vld [vmem:[%s4 + $0x60] sm:$0xff]
      %v816 = vld [vmem:[%s4 + $0x68] sm:$0xff]
      %v817 = vld [vmem:[%s4 + $0x70] sm:$0xff]
      %v818 = vld [vmem:[%s4 + $0x78] sm:$0xff]
      %v819 = vld [vmem:[%s4 + $0x80] sm:$0xff]
      %v820 = vld [vmem:[%s4 + $0x88] sm:$0xff]
      %v821 = vld [vmem:[%s4 + $0x90] sm:$0xff]
      %v822 = vld [vmem:[%s4 + $0x98] sm:$0xff]
      %v823 = vld [vmem:[%s4 + $0xa0] sm:$0xff]
      %v824 = vld [vmem:[%s4 + $0xa8] sm:$0xff]
      %v825 = vld [vmem:[%s4 + $0xb0] sm:$0xff]
      %v826 = vld [vmem:[%s4 + $0xb8] sm:$0xff]
      %v827 = vld [vmem:[%s4 + $0xc0] sm:$0xff]
      %v828 = vld [vmem:[%s4 + $0xc8] sm:$0xff]
      %v829 = vld [vmem:[%s4 + $0xd0] sm:$0xff]
      %v830 = vld [vmem:[%s4 + $0xd8] sm:$0xff]
      %v831 = vld [vmem:[%s4 + $0xe0] sm:$0xff]
      %v832 = vld [vmem:[%s4 + $0xe8] sm:$0xff]
      %v833 = vld [vmem:[%s4 + $0xf0] sm:$0xff]
      %v834 = vld [vmem:[%s4 + $0xf8] sm:$0xff]
      %v835 = vld [vmem:[%s4 + $0x100] sm:$0xff]
      %v836 = vld [vmem:[%s4 + $0x108] sm:$0xff]
      %v837 = vld [vmem:[%s4 + $0x110] sm:$0xff]
      %v838 = vld [vmem:[%s4 + $0x118] sm:$0xff]
      %v839 = vld [vmem:[%s4 + $0x120] sm:$0xff]
      %v840 = vld [vmem:[%s4 + $0x128] sm:$0xff]
      %v841 = vld [vmem:[%s4 + $0x130] sm:$0xff]
      %v842 = vld [vmem:[%s4 + $0x138] sm:$0xff]
      %v843 = vld [vmem:[%s4 + $0x140] sm:$0xff]
      %v844 = vld [vmem:[%s4 + $0x148] sm:$0xff]
      %v845 = vld [vmem:[%s4 + $0x150] sm:$0xff]
      %v846 = vld [vmem:[%s4 + $0x158] sm:$0xff]
      %v847 = vld [vmem:[%s4 + $0x160] sm:$0xff]
      %v848 = vld [vmem:[%s4 + $0x168] sm:$0xff]
      %v849 = vld [vmem:[%s4 + $0x170] sm:$0xff]
      %v850 = vld [vmem:[%s4 + $0x178] sm:$0xff]
      %v851 = vld [vmem:[%s4 + $0x180] sm:$0xff]
      %v852 = vld [vmem:[%s4 + $0x188] sm:$0xff]
      %v853 = vld [vmem:[%s4 + $0x190] sm:$0xff]
      %v854 = vld [vmem:[%s4 + $0x198] sm:$0xff]
      %v855 = vld [vmem:[%s4 + $0x1a0] sm:$0xff]
      %v856 = vld [vmem:[%s4 + $0x1a8] sm:$0xff]
      %v857 = vld [vmem:[%s4 + $0x1b0] sm:$0xff]
      %v858 = vld [vmem:[%s4 + $0x1b8] sm:$0xff]
      %v859 = vld [vmem:[%s4 + $0x1c0] sm:$0xff]
      %v860 = vld [vmem:[%s4 + $0x1c8] sm:$0xff]
      %v861 = vld [vmem:[%s4 + $0x1d0] sm:$0xff]
      %v862 = vld [vmem:[%s4 + $0x1d8] sm:$0xff]
      %v863 = vld [vmem:[%s4 + $0x1e0] sm:$0xff]
      %v864 = vld [vmem:[%s4 + $0x1e8] sm:$0xff]
      %v865 = vld [vmem:[%s4 + $0x1f0] sm:$0xff]
      %v866 = vld [vmem:[%s4 + $0x1f8] sm:$0xff]
      %v867 = vld [vmem:[%s4 + $0x200] sm:$0xff]
      %v868 = vld [vmem:[%s4 + $0x208] sm:$0xff]
      %v869 = vld [vmem:[%s4 + $0x210] sm:$0xff]
      %v870 = vld [vmem:[%s4 + $0x218] sm:$0xff]
      %v871 = vld [vmem:[%s4 + $0x220] sm:$0xff]
      %v872 = vld [vmem:[%s4 + $0x228] sm:$0xff]
      %v873 = vld [vmem:[%s4 + $0x230] sm:$0xff]
      %v874 = vld [vmem:[%s4 + $0x238] sm:$0xff]
      %v875 = vld [vmem:[%s4 + $0x240] sm:$0xff]
      %v876 = vld [vmem:[%s4 + $0x248] sm:$0xff]
      %v877 = vld [vmem:[%s4 + $0x250] sm:$0xff]
      %v878 = vld [vmem:[%s4 + $0x258] sm:$0xff]
      %v879 = vld [vmem:[%s4 + $0x260] sm:$0xff]
      %v880 = vld [vmem:[%s4 + $0x268] sm:$0xff]
      %v881 = vld [vmem:[%s4 + $0x270] sm:$0xff]
      %v882 = vld [vmem:[%s4 + $0x278] sm:$0xff]
      %v883 = vld [vmem:[%s4 + $0x280] sm:$0xff]
      %v884 = vld [vmem:[%s4 + $0x288] sm:$0xff]
      %v885 = vld [vmem:[%s4 + $0x290] sm:$0xff]
      %v886 = vld [vmem:[%s4 + $0x298] sm:$0xff]
      %v887 = vld [vmem:[%s4 + $0x2a0] sm:$0xff]
      %v888 = vld [vmem:[%s4 + $0x2a8] sm:$0xff]
      %v889 = vld [vmem:[%s4 + $0x2b0] sm:$0xff]
      %v890 = vld [vmem:[%s4 + $0x2b8] sm:$0xff]
      %v891 = vld [vmem:[%s4 + $0x2c0] sm:$0xff]
      %v892 = vld [vmem:[%s4 + $0x2c8] sm:$0xff]
      %v893 = vld [vmem:[%s4 + $0x2d0] sm:$0xff]
      %v894 = vld [vmem:[%s4 + $0x2d8] sm:$0xff]
      %v895 = vld [vmem:[%s4 + $0x2e0] sm:$0xff]
      %v896 = vld [vmem:[%s4 + $0x2e8] sm:$0xff]
      %v897 = vld [vmem:[%s4 + $0x2f0] sm:$0xff]
      %v898 = vld [vmem:[%s4 + $0x2f8] sm:$0xff]
      %v899 = vld [vmem:[%s5] sm:$0x1]
      %v901 = vlaneseq
      %v902 = vshrl.u32 %v901, 7
      %v903 = vsub.s32 0, %v902
      %v904 = vrot.slane %v899, %v903
      %v908 = vcombine.high %v801, %v801
      %v910 = vunpack.c.l.s4 1983009808
      %v911 = vunpack.c.0.s8 %v910
      %v912 = vlaneseq
      %v913 = vshrl.u32 %v912, 7
      %v914 = vsub.s32 %v911, %v913
      %v915 = vrot.slane %v801, %v914
      %v917 = vunpack.c.l.s4 1983009808
      %v918 = vunpack.c.0.s8 %v917
      %v919 = vlaneseq
      %v920 = vshrl.u32 %v919, 7
      %v921 = vsub.s32 %v918, %v920
      %v922 = vrot.slane %v908, %v921
      %v923 = vcombine.high %v915, %v915
      %v924 = vcombine.high %v922, %v922
      %v926 = vunpack.c.l.s4 1983009808
      %v927 = vunpack.c.0.s8 %v926
      %v928 = vlaneseq
      %v929 = vshrl.u32 %v928, 7
      %v930 = vsub.s32 %v927, %v929
      %v931 = vrot.slane %v802, %v930
      %v932 = vcombine.high %v931, %v931
      %939 = vmatprep.subr.mxu0 0.0
      %940 = vmatpush1.msra.mxu0 %v818
      %941 = vmatprep.subr.mxu0 0.0
      %942 = vmatpush1.msra.mxu0 %v817
      %943 = vmatprep.subr.mxu0 0.0
      %944 = vmatpush1.msra.mxu0 %v816
      %945 = vmatprep.subr.mxu0 0.0
      %946 = vmatpush1.msra.mxu0 %v815
      %947 = vmatprep.subr.mxu0 0.0
      %948 = vmatpush1.msra.mxu0 %v814
      %949 = vmatprep.subr.mxu0 0.0
      %950 = vmatpush1.msra.mxu0 %v813
      %951 = vmatprep.subr.mxu0 0.0
      %952 = vmatpush1.msra.mxu0 %v812
      %953 = vmatprep.subr.mxu0 0.0
      %954 = vmatpush1.msra.mxu0 %v811
      %955 = vmatprep.subr.mxu0 0.0
      %956 = vmatpush1.msra.mxu0 %v810
      %957 = vmatprep.subr.mxu0 0.0
      %958 = vmatpush1.msra.mxu0 %v809
      %959 = vmatprep.subr.mxu0 0.0
      %960 = vmatpush1.msra.mxu0 %v808
      %961 = vmatprep.subr.mxu0 0.0
      %962 = vmatpush1.msra.mxu0 %v807
      %963 = vmatprep.subr.mxu0 0.0
      %964 = vmatpush1.msra.mxu0 %v806
      %965 = vmatprep.subr.mxu0 0.0
      %966 = vmatpush1.msra.mxu0 %v805
      %967 = vmatprep.subr.mxu0 0.0
      %968 = vmatpush1.msra.mxu0 %v804
      %969 = vmatprep.subr.mxu0 0.0
      %970 = vmatpush1.msra.mxu0 %v803
      %971 = vmatprep.subr.mxu0 0.0
      %972 = vmatpush2.msra.mxu0 %v834
      %973 = vmatprep.subr.mxu0 0.0
      %974 = vmatpush2.msra.mxu0 %v833
      %975 = vmatprep.subr.mxu0 0.0
      %976 = vmatpush2.msra.mxu0 %v832
      %977 = vmatprep.subr.mxu0 0.0
      %978 = vmatpush2.msra.mxu0 %v831
      %979 = vmatprep.subr.mxu0 0.0
      %980 = vmatpush2.msra.mxu0 %v830
      %981 = vmatprep.subr.mxu0 0.0
      %982 = vmatpush2.msra.mxu0 %v829
      %983 = vmatprep.subr.mxu0 0.0
      %984 = vmatpush2.msra.mxu0 %v828
      %985 = vmatprep.subr.mxu0 0.0
      %986 = vmatpush2.msra.mxu0 %v827
      %987 = vmatprep.subr.mxu0 0.0
      %988 = vmatpush2.msra.mxu0 %v826
      %989 = vmatprep.subr.mxu0 0.0
      %990 = vmatpush2.msra.mxu0 %v825
      %991 = vmatprep.subr.mxu0 0.0
      %992 = vmatpush2.msra.mxu0 %v824
      %993 = vmatprep.subr.mxu0 0.0
      %994 = vmatpush2.msra.mxu0 %v823
      %995 = vmatprep.subr.mxu0 0.0
      %996 = vmatpush2.msra.mxu0 %v822
      %997 = vmatprep.subr.mxu0 0.0
      %998 = vmatpush2.msra.mxu0 %v821
      %999 = vmatprep.subr.mxu0 0.0
      %1000 = vmatpush2.msra.mxu0 %v820
      %1001 = vmatprep.subr.mxu0 0.0
      %1002 = vmatpush2.msra.mxu0 %v819
      %1003 = vmatprep.mubr.f32.mxu0 %v923
      %1004 = vmatmul.mubr.f32.gmra.mxu0 %v915
      %v1005 = vpop.f32.mrf.mxu0
      %v1006 = vadd.f32 %v904, %v1005
      %v1007 = vpop.f32.mrf.mxu0
      %1008 = vdwg.mxu0
      %1009 = vmatprep.subr.mxu0 0.0
      %1010 = vmatpush1.msra.mxu0 %v850
      %1011 = vmatprep.subr.mxu0 0.0
      %1012 = vmatpush1.msra.mxu0 %v849
      %1013 = vmatprep.subr.mxu0 0.0
      %1014 = vmatpush1.msra.mxu0 %v848
      %1015 = vmatprep.subr.mxu0 0.0
      %1016 = vmatpush1.msra.mxu0 %v847
      %1017 = vmatprep.subr.mxu0 0.0
      %1018 = vmatpush1.msra.mxu0 %v846
      %1019 = vmatprep.subr.mxu0 0.0
      %1020 = vmatpush1.msra.mxu0 %v845
      %1021 = vmatprep.subr.mxu0 0.0
      %1022 = vmatpush1.msra.mxu0 %v844
      %1023 = vmatprep.subr.mxu0 0.0
      %1024 = vmatpush1.msra.mxu0 %v843
      %1025 = vmatprep.subr.mxu0 0.0
      %1026 = vmatpush1.msra.mxu0 %v842
      %1027 = vmatprep.subr.mxu0 0.0
      %1028 = vmatpush1.msra.mxu0 %v841
      %1029 = vmatprep.subr.mxu0 0.0
      %1030 = vmatpush1.msra.mxu0 %v840
      %1031 = vmatprep.subr.mxu0 0.0
      %1032 = vmatpush1.msra.mxu0 %v839
      %1033 = vmatprep.subr.mxu0 0.0
      %1034 = vmatpush1.msra.mxu0 %v838
      %1035 = vmatprep.subr.mxu0 0.0
      %1036 = vmatpush1.msra.mxu0 %v837
      %1037 = vmatprep.subr.mxu0 0.0
      %1038 = vmatpush1.msra.mxu0 %v836
      %1039 = vmatprep.subr.mxu0 0.0
      %1040 = vmatpush1.msra.mxu0 %v835
      %1041 = vmatprep.subr.mxu0 0.0
      %1042 = vmatpush2.msra.mxu0 %v866
      %1043 = vmatprep.subr.mxu0 0.0
      %1044 = vmatpush2.msra.mxu0 %v865
      %1045 = vmatprep.subr.mxu0 0.0
      %1046 = vmatpush2.msra.mxu0 %v864
      %1047 = vmatprep.subr.mxu0 0.0
      %1048 = vmatpush2.msra.mxu0 %v863
      %1049 = vmatprep.subr.mxu0 0.0
      %1050 = vmatpush2.msra.mxu0 %v862
      %1051 = vmatprep.subr.mxu0 0.0
      %1052 = vmatpush2.msra.mxu0 %v861
      %1053 = vmatprep.subr.mxu0 0.0
      %1054 = vmatpush2.msra.mxu0 %v860
      %1055 = vmatprep.subr.mxu0 0.0
      %1056 = vmatpush2.msra.mxu0 %v859
      %1057 = vmatprep.subr.mxu0 0.0
      %1058 = vmatpush2.msra.mxu0 %v858
      %1059 = vmatprep.subr.mxu0 0.0
      %1060 = vmatpush2.msra.mxu0 %v857
      %1061 = vmatprep.subr.mxu0 0.0
      %1062 = vmatpush2.msra.mxu0 %v856
      %1063 = vmatprep.subr.mxu0 0.0
      %1064 = vmatpush2.msra.mxu0 %v855
      %1065 = vmatprep.subr.mxu0 0.0
      %1066 = vmatpush2.msra.mxu0 %v854
      %1067 = vmatprep.subr.mxu0 0.0
      %1068 = vmatpush2.msra.mxu0 %v853
      %1069 = vmatprep.subr.mxu0 0.0
      %1070 = vmatpush2.msra.mxu0 %v852
      %1071 = vmatprep.subr.mxu0 0.0
      %1072 = vmatpush2.msra.mxu0 %v851
      %1073 = vmatprep.mubr.f32.mxu0 %v924
      %1074 = vmatmul.mubr.f32.gmra.mxu0 %v922
      %v1075 = vpop.f32.mrf.mxu0
      %v1076 = vadd.f32 %v1006, %v1075
      %v1077 = vpop.f32.mrf.mxu0
      %1078 = vdwg.mxu0
      %1079 = vmatprep.subr.mxu0 0.0
      %1080 = vmatpush1.msra.mxu0 %v882
      %1081 = vmatprep.subr.mxu0 0.0
      %1082 = vmatpush1.msra.mxu0 %v881
      %1083 = vmatprep.subr.mxu0 0.0
      %1084 = vmatpush1.msra.mxu0 %v880
      %1085 = vmatprep.subr.mxu0 0.0
      %1086 = vmatpush1.msra.mxu0 %v879
      %1087 = vmatprep.subr.mxu0 0.0
      %1088 = vmatpush1.msra.mxu0 %v878
      %1089 = vmatprep.subr.mxu0 0.0
      %1090 = vmatpush1.msra.mxu0 %v877
      %1091 = vmatprep.subr.mxu0 0.0
      %1092 = vmatpush1.msra.mxu0 %v876
      %1093 = vmatprep.subr.mxu0 0.0
      %1094 = vmatpush1.msra.mxu0 %v875
      %1095 = vmatprep.subr.mxu0 0.0
      %1096 = vmatpush1.msra.mxu0 %v874
      %1097 = vmatprep.subr.mxu0 0.0
      %1098 = vmatpush1.msra.mxu0 %v873
      %1099 = vmatprep.subr.mxu0 0.0
      %1100 = vmatpush1.msra.mxu0 %v872
      %1101 = vmatprep.subr.mxu0 0.0
      %1102 = vmatpush1.msra.mxu0 %v871
      %1103 = vmatprep.subr.mxu0 0.0
      %1104 = vmatpush1.msra.mxu0 %v870
      %1105 = vmatprep.subr.mxu0 0.0
      %1106 = vmatpush1.msra.mxu0 %v869
      %1107 = vmatprep.subr.mxu0 0.0
      %1108 = vmatpush1.msra.mxu0 %v868
      %1109 = vmatprep.subr.mxu0 0.0
      %1110 = vmatpush1.msra.mxu0 %v867
      %1111 = vmatprep.subr.mxu0 0.0
      %1112 = vmatpush2.msra.mxu0 %v898
      %1113 = vmatprep.subr.mxu0 0.0
      %1114 = vmatpush2.msra.mxu0 %v897
      %1115 = vmatprep.subr.mxu0 0.0
      %1116 = vmatpush2.msra.mxu0 %v896
      %1117 = vmatprep.subr.mxu0 0.0
      %1118 = vmatpush2.msra.mxu0 %v895
      %1119 = vmatprep.subr.mxu0 0.0
      %1120 = vmatpush2.msra.mxu0 %v894
      %1121 = vmatprep.subr.mxu0 0.0
      %1122 = vmatpush2.msra.mxu0 %v893
      %1123 = vmatprep.subr.mxu0 0.0
      %1124 = vmatpush2.msra.mxu0 %v892
      %1125 = vmatprep.subr.mxu0 0.0
      %1126 = vmatpush2.msra.mxu0 %v891
      %1127 = vmatprep.subr.mxu0 0.0
      %1128 = vmatpush2.msra.mxu0 %v890
      %1129 = vmatprep.subr.mxu0 0.0
      %1130 = vmatpush2.msra.mxu0 %v889
      %1131 = vmatprep.subr.mxu0 0.0
      %1132 = vmatpush2.msra.mxu0 %v888
      %1133 = vmatprep.subr.mxu0 0.0
      %1134 = vmatpush2.msra.mxu0 %v887
      %1135 = vmatprep.subr.mxu0 0.0
      %1136 = vmatpush2.msra.mxu0 %v886
      %1137 = vmatprep.subr.mxu0 0.0
      %1138 = vmatpush2.msra.mxu0 %v885
      %1139 = vmatprep.subr.mxu0 0.0
      %1140 = vmatpush2.msra.mxu0 %v884
      %1141 = vmatprep.subr.mxu0 0.0
      %1142 = vmatpush2.msra.mxu0 %v883
      %1143 = vmatprep.mubr.f32.mxu0 %v932
      %1144 = vmatmul.mubr.f32.gmra.mxu0 %v931
      %v1145 = vpop.f32.mrf.mxu0
      %v1146 = vadd.f32 %v1076, %v1145
      %v1147 = vpop.f32.mrf.mxu0
      %1148 = vdwg.mxu0
      %1149 = vst [vmem:[#allocation4] sm:$0x3] %v1146
    $region37: #{visual_classification_forward.1} parent=1 // pred_fallthru
      _
    // Predicated region
    $region38: #{visual_classification_forward.1} parent=1 // pred_check
      _
    $region39: #{visual_classification_forward.1} parent=1 // pred_check_branch
      %1151 = sbr.rel (0) target = $region41
    $region40: #{visual_classification_forward.1} parent=1 // pred_region
      %s1153 = ssub.s32 32, 32
      %1154 = vsyncadd [#allocation5], %s1153
      %s1156 = sshll.u32 [#allocation4], 4
      %s1157 = int_to_ptr.vmem [resolvable:$true] %s1156
      %1159 = dma.vmem_to_hbm [thread:$0]  %s1157, 32, %s7, [#allocation5]
    $region41: #{visual_classification_forward.1} parent=1 // pred_fallthru
      _
    // Predicated region
    $region42: #{visual_classification_forward.1} parent=1 // pred_check
      _
    $region43: #{visual_classification_forward.1} parent=1 // pred_check_branch
      %1161 = sbr.rel (0) target = $region45
    $region44: #{visual_classification_forward.1} parent=1 // pred_region
      %1162 = dma.done [#allocation5], 32
    $region45: #{visual_classification_forward.1} parent=1 // pred_fallthru
      _
    %1163 = vsyncpa [#allocation5], 1

</llo_original>
